<compile_context>
chip_gen: v7x
topology: tpu7x:2x2x1
jax: 0.10.0
libtpu: 0.0.40
codegen_flags: <defaults>
</compile_context>

<pallas_src>
import math
import functools

import jax
import jax.numpy as jnp
from jax.experimental import pallas as pl
from jax.experimental.pallas import tpu as pltpu


# ---------------------------------------------------------------------------
# Parameter / buffer construction (glue, plain JAX)
# ---------------------------------------------------------------------------
def make_positional_encoding(d_model: int, max_len: int = 128) -> jnp.ndarray:
    """Sinusoidal positional-encoding buffer, shape (max_len, 1, d_model)."""
    position = jnp.arange(max_len, dtype=jnp.float32)[:, None]           # (max_len, 1)
    div_term = jnp.exp(
        jnp.arange(0, d_model, 2, dtype=jnp.float32) * (-math.log(10000.0) / d_model)
    )                                                                     # (d_model//2,)
    angles = position * div_term                                          # (max_len, d_model//2)
    pe = jnp.zeros((max_len, d_model), dtype=jnp.float32)
    pe = pe.at[:, 0::2].set(jnp.sin(angles))
    pe = pe.at[:, 1::2].set(jnp.cos(angles))
    return pe[:, None, :]                                                 # (max_len, 1, d_model)


# ---------------------------------------------------------------------------
# Pallas kernels (operate on lane-dense 2-D (tq, B*D) tiles)
# ---------------------------------------------------------------------------
def _pe_add_kernel(x_ref, pe_ref, o_ref):
    """Eval-mode forward: out = x + pe (dropout is identity)."""
    o_ref[...] = (x_ref[...] + pe_ref[...]).astype(o_ref.dtype)


def _pe_add_dropout_kernel(x_ref, pe_ref, bits_ref, o_ref, *, threshold: int, scale: float):
    """Training-mode forward: out = dropout(x + pe, p) with inverted scaling.

    Keep decision stays in integer domain: P(bits < threshold) = p  =>  drop.
    """
    y = x_ref[...] + pe_ref[...]
    keep = bits_ref[...] >= jnp.uint32(threshold)
    o_ref[...] = (jnp.where(keep, y, 0.0) * jnp.asarray(scale, y.dtype)).astype(o_ref.dtype)


# ---------------------------------------------------------------------------
# Wrapper
# ---------------------------------------------------------------------------
def _choose_seq_tile(S: int, row_bytes: int, target_bytes: int = 1 << 20) -> int:
    """Pick a sequence-tile size: ~1 MiB per block, multiple of 8, capped at S.

    1 MiB per buffer keeps double-buffered totals well inside v7x's 32 MiB
    scoped VMEM default (and trivially inside v5e/v6e).
    """
    if S <= 8:
        return S
    tq = (target_bytes // max(row_bytes, 1)) // 8 * 8
    tq = max(8, tq)
    return S if tq >= S else tq


def positional_encoding_forward(
    x: jnp.ndarray,
    pe: jnp.ndarray,
    *,
    dropout_p: float = 0.1,
    training: bool = False,
    rng_key=None,
) -> jnp.ndarray:
    """Pallas version of PositionalEncoding.forward.

    x : (seq_len, batch, d_model)
    pe: (max_len, 1, d_model), max_len >= seq_len
    """
    S, B, D = x.shape
    BD = B * D

    # Lane-dense 2-D view (free reshape: memory is contiguous).
    x2 = x.reshape(S, BD)
    # Pre-cast pe to x.dtype and pre-tile over batch once in the wrapper.
    pe2 = jnp.broadcast_to(pe[:S].astype(x.dtype), (S, B, D)).reshape(S, BD)

    tq = _choose_seq_tile(S, BD * x.dtype.itemsize)
    grid = (pl.cdiv(S, tq),)

    blk = pl.BlockSpec((tq, BD), lambda i: (i, 0))
    out_shape = jax.ShapeDtypeStruct((S, BD), x.dtype)
    cparams = pltpu.CompilerParams(dimension_semantics=("parallel",))

    if (not training) or dropout_p == 0.0:
        out2 = pl.pallas_call(
            _pe_add_kernel,
            grid=grid,
            in_specs=[blk, blk],
            out_specs=blk,
            out_shape=out_shape,
            compiler_params=cparams,
        )(x2, pe2)
        return out2.reshape(S, B, D)

    if rng_key is None:
        rng_key = jax.random.PRNGKey(0)
    # Random bits generated host/XLA-side (portable); consumed as uint32 inside
    # the kernel with a pure integer threshold compare.
    bits = jax.random.bits(rng_key, (S, BD), dtype=jnp.uint32)
    threshold = min(int(round(float(dropout_p) * 4294967296.0)), 4294967295)
    scale = 1.0 / (1.0 - float(dropout_p))
    kernel = functools.partial(_pe_add_dropout_kernel, threshold=threshold, scale=scale)

    out2 = pl.pallas_call(
        kernel,
        grid=grid,
        in_specs=[blk, blk, blk],
        out_specs=blk,
        out_shape=out_shape,
        compiler_params=cparams,
    )(x2, pe2, bits)
    return out2.reshape(S, B, D)


# ---------------------------------------------------------------------------
# Main
# ---------------------------------------------------------------------------
if __name__ == "__main__":
    seq_len, batch, d_model = 16, 2, 128
    max_len = 128
    dropout_p = 0.1

    key = jax.random.PRNGKey(0)
    kx, kdrop = jax.random.split(key)
    x = jax.random.normal(kx, (seq_len, batch, d_model), dtype=jnp.float32)
    pe = make_positional_encoding(d_model, max_len)

    # Eval-mode forward (dropout is identity): exact semantics, checkable.
    out = positional_encoding_forward(x, pe, dropout_p=dropout_p, training=False)
    out = jax.block_until_ready(out)
    ref = x + pe[:seq_len]
    assert out.shape == (seq_len, batch, d_model)
    assert jnp.allclose(out, ref, atol=1e-6), "eval-mode mismatch vs reference"

    # Training-mode forward: every element must be either 0 (dropped) or
    # (x + pe) / (1 - p) (kept).  RNG stream cannot bitwise-match torch.
    out_train = positional_encoding_forward(
        x, pe, dropout_p=dropout_p, training=True, rng_key=kdrop
    )
    out_train = jax.block_until_ready(out_train)
    assert out_train.shape == (seq_len, batch, d_model)
    scaled = ref / (1.0 - dropout_p)
    ok = jnp.isclose(out_train, 0.0) | jnp.isclose(out_train, scaled, rtol=1e-5, atol=1e-5)
    assert bool(jnp.all(ok)), "training-mode dropout values inconsistent"

    print("KERNEL_OK")
</pallas_src>

<mosaic_0001>
module attributes {stable_mosaic.version = 11 : i64} {
  func.func @_pe_add_kernel(%arg0: i32, %arg1: memref<16x256xf32, #tpu.memory_space<vmem>>, %arg2: memref<16x256xf32, #tpu.memory_space<vmem>>, %arg3: memref<16x256xf32, #tpu.memory_space<vmem>>) attributes {dimension_semantics = [#tpu.dimension_semantics<parallel>], iteration_bounds = array<i64: 1>, scalar_prefetch = 0 : i64, scratch_operands = 0 : i64, tpu.core_type = #tpu.core_type<tc>, window_params = [{transform_indices = @transform_0, window_bounds = array<i64: 16, 256>}, {transform_indices = @transform_1, window_bounds = array<i64: 16, 256>}, {transform_indices = @transform_2, window_bounds = array<i64: 16, 256>}]} {
    %c0 = arith.constant 0 : index
    %c0_0 = arith.constant 0 : index
    %0 = vector.load %arg1[%c0, %c0_0] : memref<16x256xf32, #tpu.memory_space<vmem>>, vector<16x256xf32>
    %c0_1 = arith.constant 0 : index
    %c0_2 = arith.constant 0 : index
    %1 = vector.load %arg2[%c0_1, %c0_2] : memref<16x256xf32, #tpu.memory_space<vmem>>, vector<16x256xf32>
    %2 = arith.addf %0, %1 : vector<16x256xf32>
    %c0_3 = arith.constant 0 : index
    %c0_4 = arith.constant 0 : index
    %3 = vector.load %arg3[%c0_3, %c0_4] : memref<16x256xf32, #tpu.memory_space<vmem>>, vector<16x256xf32>
    tpu.vector_store %arg3[%c0_3, %c0_4], %2 {strides = array<i32>} : memref<16x256xf32, #tpu.memory_space<vmem>>, vector<16x256xf32>,
    return
  }
  func.func @transform_0(%arg0: i32) -> (i32, i32) {
    %c0_i32 = arith.constant 0 : i32
    %c0_i32_0 = arith.constant 0 : i32
    return %arg0, %c0_i32 : i32, i32
  }
  func.func @transform_1(%arg0: i32) -> (i32, i32) {
    %c0_i32 = arith.constant 0 : i32
    %c0_i32_0 = arith.constant 0 : i32
    return %arg0, %c0_i32 : i32, i32
  }
  func.func @transform_2(%arg0: i32) -> (i32, i32) {
    %c0_i32 = arith.constant 0 : i32
    %c0_i32_0 = arith.constant 0 : i32
    return %arg0, %c0_i32 : i32, i32
  }
}

</mosaic_0001>

<llo_original>
// kernel: tpu_custom_call.1
$region0: #{tpu_custom_call.1}
  #allocation0 [shape = 'u32[]', space=smem, size = 0x4, offset = 0x4, fixed_abs, tag = 'smem constant byte address 0x4 - core index']
  #allocation1 [shape = 'u32[144,128]{1,0:T(1,128)}', space=vmem, size = 0x12000, scoped, tag = 'internal scratch']
  %s0 = inlined_call_operand.hbm [shape: f32[16,256], index: 0, kind: input, shape index: {}]
  %s1 = inlined_call_operand.hbm [shape: f32[16,256], index: 1, kind: input, shape index: {}]
  %s2 = inlined_call_operand.hbm [shape: f32[16,256], index: 2, kind: output, shape index: {}]
  %s3 = sld [smem:[#allocation0]]
  $region26: #{tpu_custom_call.1} parent=0
    _
  %s5 = ssub.s32 1, %s3
  %s6 = scalar_select 0, %s5, %s3
  $region1: #{tpu_custom_call.1} parent=0
    #allocation2 [shape = 'u8[16384]{0}', space=vmem, size = 0x4000, scoped, tag = 'input window, operand 0, single buffered']
    #allocation3 [shape = 's32[1]{0}', space=sflag, size = 0x4, scoped, tag = 'scoped memory for tpu_custom_call.1']
    #allocation4 [shape = 's32[1]{0}', space=sflag, size = 0x4, scoped, tag = 'scoped memory for tpu_custom_call.1']
    #allocation5 [shape = 'u8[16384]{0}', space=vmem, size = 0x4000, scoped, tag = 'input window, operand 1, single buffered']
    #allocation6 [shape = 's32[1]{0}', space=sflag, size = 0x4, scoped, tag = 'scoped memory for tpu_custom_call.1']
    #allocation7 [shape = 'u8[16384]{0}', space=vmem, size = 0x4000, scoped, tag = 'output window, operand 0, single buffered']
    %7 = vsyncpa [#allocation3], 0
    %8 = vsyncpa [#allocation6], 0
    %9 = vsyncpa [#allocation4], 0
    // Predicated region
    $region2: #{tpu_custom_call.1} parent=1 // pred_check
      _
    $region3: #{tpu_custom_call.1} parent=1 // pred_check_branch
      %11 = sbr.rel (0) target = $region5
    $region4: #{tpu_custom_call.1} parent=1 // pred_region
      %s13 = ssub.s32 512, 512
      %14 = vsyncadd [#allocation3], %s13
      %s15 = sshll.u32 [#allocation2], 4
      %s16 = int_to_ptr.vmem [resolvable:$true] %s15
      %21 = dma.hbm_to_vmem [thread:$0]  %s0, 512, %s16, [#allocation3], 256, 256, 16
    $region5: #{tpu_custom_call.1} parent=1 // pred_fallthru
      _
    // Predicated region
    $region6: #{tpu_custom_call.1} parent=1 // pred_check
      _
    $region7: #{tpu_custom_call.1} parent=1 // pred_check_branch
      %23 = sbr.rel (0) target = $region9
    $region8: #{tpu_custom_call.1} parent=1 // pred_region
      %s25 = ssub.s32 512, 512
      %26 = vsyncadd [#allocation6], %s25
      %s27 = sshll.u32 [#allocation5], 4
      %s28 = int_to_ptr.vmem [resolvable:$true] %s27
      %33 = dma.hbm_to_vmem [thread:$0]  %s1, 512, %s28, [#allocation6], 256, 256, 16
    $region9: #{tpu_custom_call.1} parent=1 // pred_fallthru
      _
    // Predicated region
    $region10: #{tpu_custom_call.1} parent=1 // pred_check
      _
    $region11: #{tpu_custom_call.1} parent=1 // pred_check_branch
      %35 = sbr.rel (0) target = $region13
    $region12: #{tpu_custom_call.1} parent=1 // pred_region
      %36 = dma.done [#allocation3], 512
    $region13: #{tpu_custom_call.1} parent=1 // pred_fallthru
      _
    // Predicated region
    $region14: #{tpu_custom_call.1} parent=1 // pred_check
      _
    $region15: #{tpu_custom_call.1} parent=1 // pred_check_branch
      %38 = sbr.rel (0) target = $region17
    $region16: #{tpu_custom_call.1} parent=1 // pred_region
      %39 = dma.done [#allocation6], 512
    $region17: #{tpu_custom_call.1} parent=1 // pred_fallthru
      _
    %v40 = vld [vmem:[#allocation2] sm:$0xff]
    %v41 = vld [vmem:[#allocation2 + $0x8] sm:$0xff]
    %v42 = vld [vmem:[#allocation2 + $0x10] sm:$0xff]
    %v43 = vld [vmem:[#allocation2 + $0x18] sm:$0xff]
    %v44 = vld [vmem:[#allocation5] sm:$0xff]
    %v45 = vld [vmem:[#allocation5 + $0x8] sm:$0xff]
    %v46 = vld [vmem:[#allocation5 + $0x10] sm:$0xff]
    %v47 = vld [vmem:[#allocation5 + $0x18] sm:$0xff]
    %v48 = vadd.f32 %v40, %v44
    %v49 = vadd.f32 %v41, %v45
    %v50 = vadd.f32 %v42, %v46
    %v51 = vadd.f32 %v43, %v47
    %52 = vst [vmem:[#allocation7] sm:$0xff] %v48
    %53 = vst [vmem:[#allocation7 + $0x8] sm:$0xff] %v49
    %54 = vst [vmem:[#allocation7 + $0x10] sm:$0xff] %v50
    %55 = vst [vmem:[#allocation7 + $0x18] sm:$0xff] %v51
    // Predicated region
    $region18: #{tpu_custom_call.1} parent=1 // pred_check
      _
    $region19: #{tpu_custom_call.1} parent=1 // pred_check_branch
      %57 = sbr.rel (0) target = $region21
    $region20: #{tpu_custom_call.1} parent=1 // pred_region
      %s59 = ssub.s32 512, 512
      %60 = vsyncadd [#allocation4], %s59
      %s61 = sshll.u32 [#allocation7], 4
      %s62 = int_to_ptr.vmem [resolvable:$true] %s61
      %67 = dma.vmem_to_hbm [thread:$0]  %s62, 512, %s2, [#allocation4], 256, 256, 16
    $region21: #{tpu_custom_call.1} parent=1 // pred_fallthru
      _
    // Predicated region
    $region22: #{tpu_custom_call.1} parent=1 // pred_check
      _
    $region23: #{tpu_custom_call.1} parent=1 // pred_check_branch
      %69 = sbr.rel (0) target = $region25
    $region24: #{tpu_custom_call.1} parent=1 // pred_region
      %70 = dma.done [#allocation4], 512
    $region25: #{tpu_custom_call.1} parent=1 // pred_fallthru
      _
    %71 = vsyncpa [#allocation3], 1
    %72 = vsyncpa [#allocation6], 1
    %73 = vsyncpa [#allocation4], 1

</llo_original>
